<compile_context>
chip_gen: v6e
topology: v6e:2x2x1
jax: 0.10.0
libtpu: 0.0.40
codegen_flags: <defaults>
</compile_context>

<pallas_src>
import functools

import jax
import jax.numpy as jnp
from jax.experimental import pallas as pl
from jax.experimental.pallas import tpu as pltpu


def _logreg_kernel(x_ref, w_ref, b_ref, o_ref, *, groups, feat):
    # x_ref: (TB, L) f32 VMEM (streamed), w_ref: (1, L) f32 VMEM (resident),
    # b_ref: (1, 1) f32 SMEM scalar, o_ref: (TB, groups) f32 VMEM.
    x = x_ref[...]
    w = w_ref[...]
    prod = x * w                               # VPU broadcast multiply
    b = b_ref[0, 0]
    if groups == 1:
        # Generic path: one dot product per row over the full last axis.
        z = jnp.sum(prod, axis=-1, keepdims=True) + b
    else:
        # Packed path: each 128-lane row holds `groups` original rows of `feat`
        # features; reduce each lane group (XLU) and place results in adjacent lanes.
        parts = [
            jnp.sum(prod[:, g * feat:(g + 1) * feat], axis=-1, keepdims=True)
            for g in range(groups)
        ]
        z = jnp.concatenate(parts, axis=-1) + b
    # Numerically stable sigmoid; exp issues on the otherwise-idle EUP slot.
    o_ref[...] = jax.nn.sigmoid(z).astype(o_ref.dtype)


def _vmem_capacity_bytes():
    """Physical VMEM bytes for this generation (conservative fallback)."""
    try:
        info = pltpu.get_tpu_info()
        cap = getattr(info, "vmem_capacity_bytes", None)
        if cap:
            return int(cap)
    except Exception:
        pass
    return 64 * 1024 * 1024  # v7x-sized fallback; safe on every generation


def _choose_batch_tile(n_rows, lane_width, out_width, itemsize, *, target_steps=8):
    """Byte-based, generation-aware batch-tile size (rows, multiple of 8)."""

    def pad128(w):
        return ((max(int(w), 1) + 127) // 128) * 128

    vmem = _vmem_capacity_bytes()
    # Per-row VMEM bytes of the pipeline working set: double-buffered x block
    # plus double-buffered (lane-padded) output block.
    row_vmem = 2 * (pad128(lane_width) + pad128(out_width)) * itemsize
    row_hbm = max(lane_width * itemsize, 1)

    # Keep the working set around 1/3 of physical VMEM (headroom for the
    # resident weight tile and compiler scratch on v5e/v6e/v7x alike).
    budget_rows = max(8, ((vmem // 3) // row_vmem) // 8 * 8)

    # Prefer >= target_steps grid steps (pipelining + v7x megacore sharding),
    # but never shrink a tile below ~512 KiB of real HBM data so the per-step
    # overhead stays negligible.
    floor_rows = max(8, ((512 * 1024) // row_hbm) // 8 * 8)
    step_rows = max(floor_rows, ((pl.cdiv(n_rows, target_steps) + 7) // 8) * 8)

    rows = min(budget_rows, step_rows)
    if rows >= n_rows:
        return int(n_rows)
    return int(rows)


def log_regression_forward(x, weight, bias, *, batch_tile=None):
    """sigmoid(x @ weight.T + bias): x (B, F), weight (1, F), bias (1,) -> (B, 1)."""
    B, F = x.shape
    dtype = x.dtype
    itemsize = jnp.dtype(dtype).itemsize
    w2d = weight.reshape(1, F).astype(dtype)
    b2d = bias.reshape(1, 1).astype(dtype)

    # Pack rows into full 128-lane vregs when the feature dim is narrow: the
    # (B, F) -> (B*F/128, 128) view is free (row-major contiguous) and carries
    # 128/F rows of real work per vreg instead of F/128 of one.
    groups = 1
    if F < 128 and 128 % F == 0 and (B * F) % 128 == 0 and (128 // F) <= 16:
        groups = 128 // F

    if groups > 1:
        n_rows = B // groups
        lane_w = 128
        x_in = x.reshape(n_rows, lane_w)
        w_in = jnp.tile(w2d, (1, groups))          # weight repeated once per lane group
        out_w = groups
    else:
        n_rows = B
        lane_w = F
        x_in = x
        w_in = w2d
        out_w = 1

    if batch_tile is not None:
        tb = int(min(batch_tile, n_rows))
    else:
        tb = _choose_batch_tile(n_rows, lane_w, out_w, itemsize)
    grid = (pl.cdiv(n_rows, tb),)

    kernel = functools.partial(_logreg_kernel, groups=groups, feat=F)
    vmem_cap = _vmem_capacity_bytes()

    y = pl.pallas_call(
        kernel,
        out_shape=jax.ShapeDtypeStruct((n_rows, out_w), dtype),
        grid_spec=pltpu.PrefetchScalarGridSpec(
            num_scalar_prefetch=0,
            grid=grid,
            in_specs=[
                # x: streamed per batch tile (double-buffered by the pipeline).
                pl.BlockSpec((tb, lane_w), lambda i: (i, 0)),
                # weight: constant block index -> stays resident in VMEM.
                pl.BlockSpec((1, lane_w), lambda i: (0, 0)),
                # bias: single scalar in SMEM, no VMEM tile.
                pl.BlockSpec(memory_space=pltpu.SMEM),
            ],
            out_specs=pl.BlockSpec((tb, out_w), lambda i: (i, 0)),
        ),
        compiler_params=pltpu.CompilerParams(
            dimension_semantics=("parallel",),
            # Raise the scoped-VMEM ceiling (v5e defaults to 16 MiB) while
            # staying well inside physical VMEM on every generation.
            vmem_limit_bytes=int(vmem_cap // 2),
        ),
    )(x_in, w_in, b2d)

    return y.reshape(B, 1)


if __name__ == "__main__":
    key = jax.random.PRNGKey(0)
    kx, kw, kb, kx2 = jax.random.split(key, 4)

    def init_params(k_w, k_b, n_features):
        # Mimic nn.Linear's uniform(-1/sqrt(F), 1/sqrt(F)) init, deterministically.
        bound = 1.0 / jnp.sqrt(jnp.float32(n_features))
        w = jax.random.uniform(k_w, (1, n_features), jnp.float32, -bound, bound)
        b = jax.random.uniform(k_b, (1,), jnp.float32, -bound, bound)
        return w, b

    def ref(xv, wv, bv):
        return jax.nn.sigmoid(xv @ wv.T + bv)

    # Case 1: small demo shape; F=32 takes the packed 128-lane path (4 rows/vreg).
    B1, F1 = 8, 32
    x1 = jax.random.normal(kx, (B1, F1), dtype=jnp.float32)
    w1, b1 = init_params(kw, kb, F1)
    y1 = jax.block_until_ready(log_regression_forward(x1, w1, b1))
    assert y1.shape == (B1, 1)
    assert jnp.allclose(y1, ref(x1, w1, b1), atol=1e-5, rtol=1e-5)

    # Case 2: multi-step grid on the packed path (forced small batch tile).
    B2, F2 = 64, 32
    x2 = jax.random.normal(kx2, (B2, F2), dtype=jnp.float32)
    y2 = jax.block_until_ready(log_regression_forward(x2, w1, b1, batch_tile=8))
    assert jnp.allclose(y2, ref(x2, w1, b1), atol=1e-5, rtol=1e-5)

    # Case 3: feature count that does not divide 128 -> generic (unpacked) path.
    B3, F3 = 8, 40
    kx3, kw3, kb3 = jax.random.split(kb, 3)
    x3 = jax.random.normal(kx3, (B3, F3), dtype=jnp.float32)
    w3, b3 = init_params(kw3, kb3, F3)
    y3 = jax.block_until_ready(log_regression_forward(x3, w3, b3))
    assert jnp.allclose(y3, ref(x3, w3, b3), atol=1e-5, rtol=1e-5)

    print("KERNEL_OK")
</pallas_src>

<mosaic_0001>
module attributes {stable_mosaic.version = 11 : i64} {
  func.func @_logreg_kernel(%arg0: i32, %arg1: memref<2x128xf32, #tpu.memory_space<vmem>>, %arg2: memref<1x128xf32, #tpu.memory_space<vmem>>, %arg3: memref<1x1xf32, #tpu.memory_space<smem>>, %arg4: memref<2x4xf32, #tpu.memory_space<vmem>>) attributes {dimension_semantics = [#tpu.dimension_semantics<parallel>], iteration_bounds = array<i64: 1>, scalar_prefetch = 0 : i64, scratch_operands = 0 : i64, tpu.core_type = #tpu.core_type<tc>, window_params = [{transform_indices = @transform_0, window_bounds = array<i64: 2, 128>}, {pipeline_mode = #tpu.pipeline_mode<synchronous>, transform_indices = @transform_1, window_bounds = array<i64: 1, 128>}, {transform_indices = @transform_2, window_bounds = array<i64: 1, 1>}, {transform_indices = @transform_3, window_bounds = array<i64: 2, 4>}]} {
    %c0 = arith.constant 0 : index
    %c0_0 = arith.constant 0 : index
    %0 = vector.load %arg1[%c0, %c0_0] : memref<2x128xf32, #tpu.memory_space<vmem>>, vector<2x128xf32>
    %c0_1 = arith.constant 0 : index
    %c0_2 = arith.constant 0 : index
    %1 = vector.load %arg2[%c0_1, %c0_2] : memref<1x128xf32, #tpu.memory_space<vmem>>, vector<1x128xf32>
    %2 = vector.broadcast %1 : vector<1x128xf32> to vector<2x128xf32>
    %3 = arith.mulf %0, %2 : vector<2x128xf32>
    %c0_3 = arith.constant 0 : index
    %c0_4 = arith.constant 0 : index
    %4 = memref.load %arg3[%c0_3, %c0_4] : memref<1x1xf32, #tpu.memory_space<smem>>
    %5 = vector.extract_strided_slice %3 {offsets = [0, 0], sizes = [2, 32], strides = [1, 1]} : vector<2x128xf32> to vector<2x32xf32>
    %cst = arith.constant dense<0.000000e+00> : vector<2xf32>
    %6 = vector.multi_reduction <add>, %5, %cst [1] : vector<2x32xf32> to vector<2xf32>
    %7 = vector.shape_cast %6 : vector<2xf32> to vector<2x1xf32>
    %8 = vector.extract_strided_slice %3 {offsets = [0, 32], sizes = [2, 32], strides = [1, 1]} : vector<2x128xf32> to vector<2x32xf32>
    %cst_5 = arith.constant dense<0.000000e+00> : vector<2xf32>
    %9 = vector.multi_reduction <add>, %8, %cst_5 [1] : vector<2x32xf32> to vector<2xf32>
    %10 = vector.shape_cast %9 : vector<2xf32> to vector<2x1xf32>
    %11 = vector.extract_strided_slice %3 {offsets = [0, 64], sizes = [2, 32], strides = [1, 1]} : vector<2x128xf32> to vector<2x32xf32>
    %cst_6 = arith.constant dense<0.000000e+00> : vector<2xf32>
    %12 = vector.multi_reduction <add>, %11, %cst_6 [1] : vector<2x32xf32> to vector<2xf32>
    %13 = vector.shape_cast %12 : vector<2xf32> to vector<2x1xf32>
    %14 = vector.extract_strided_slice %3 {offsets = [0, 96], sizes = [2, 32], strides = [1, 1]} : vector<2x128xf32> to vector<2x32xf32>
    %cst_7 = arith.constant dense<0.000000e+00> : vector<2xf32>
    %15 = vector.multi_reduction <add>, %14, %cst_7 [1] : vector<2x32xf32> to vector<2xf32>
    %16 = vector.shape_cast %15 : vector<2xf32> to vector<2x1xf32>
    %17 = tpu.concatenate %7, %10, %13, %16 in 1 : vector<2x1xf32>, vector<2x1xf32>, vector<2x1xf32>, vector<2x1xf32> -> vector<2x4xf32>
    %18 = vector.broadcast %4 : f32 to vector<2x4xf32>
    %19 = arith.addf %17, %18 : vector<2x4xf32>
    %20 = arith.negf %19 : vector<2x4xf32>
    %21 = math.exp %20 : vector<2x4xf32>
    %cst_8 = arith.constant 1.000000e+00 : f32
    %22 = vector.broadcast %cst_8 : f32 to vector<2x4xf32>
    %23 = arith.addf %22, %21 : vector<2x4xf32>
    %24 = arith.divf %22, %23 : vector<2x4xf32>
    %c0_9 = arith.constant 0 : index
    %c0_10 = arith.constant 0 : index
    %25 = vector.load %arg4[%c0_9, %c0_10] : memref<2x4xf32, #tpu.memory_space<vmem>>, vector<2x4xf32>
    tpu.vector_store %arg4[%c0_9, %c0_10], %24 {strides = array<i32>} : memref<2x4xf32, #tpu.memory_space<vmem>>, vector<2x4xf32>,
    return
  }
  func.func @transform_0(%arg0: i32) -> (i32, i32) {
    %c0_i32 = arith.constant 0 : i32
    %c0_i32_0 = arith.constant 0 : i32
    return %arg0, %c0_i32 : i32, i32
  }
  func.func @transform_1(%arg0: i32) -> (i32, i32) {
    %c0_i32 = arith.constant 0 : i32
    %c0_i32_0 = arith.constant 0 : i32
    %c0_i32_1 = arith.constant 0 : i32
    return %c0_i32, %c0_i32_0 : i32, i32
  }
  func.func @transform_2(%arg0: i32) -> (i32, i32) {
    %c0_i32 = arith.constant 0 : i32
    %c0_i32_0 = arith.constant 0 : i32
    %c0_i32_1 = arith.constant 0 : i32
    return %c0_i32, %c0_i32_0 : i32, i32
  }
  func.func @transform_3(%arg0: i32) -> (i32, i32) {
    %c0_i32 = arith.constant 0 : i32
    %c0_i32_0 = arith.constant 0 : i32
    return %arg0, %c0_i32 : i32, i32
  }
}

</mosaic_0001>

<llo_original>
// kernel: tpu_custom_call.1
$region0: #{tpu_custom_call.1}
  #allocation0 [shape = 'u32[]', space=smem, size = 0x4, offset = 0x4, fixed_abs, tag = 'smem constant byte address 0x4 - core index']
  #allocation1 [shape = 'u32[144,128]{1,0:T(1,128)}', space=vmem, size = 0x12000, scoped, tag = 'internal scratch']
  #allocation2 [shape = 'f32[1,1]{1,0:T(1,128)S(6)}', space=smem, size = 0x200, scoped, tag = 'scoped memory for tpu_custom_call.1']
  %s0 = inlined_call_operand.vmem [shape: f32[2,128], index: 0, kind: input, shape index: {}]
  %s1 = inlined_call_operand.vmem [shape: f32[1,128], index: 1, kind: input, shape index: {}]
  %s2 = inlined_call_operand.<no memory space> [shape: f32[1,1], index: 2, kind: input, shape index: {}]
  %s3 = inlined_call_operand.hbm [shape: f32[2,4], index: 3, kind: output, shape index: {}]
  %s4 = sld [smem:[#allocation0]]
  $region22: #{tpu_custom_call.1} parent=0
    _
  %s6 = ssub.s32 1, %s4
  %s7 = scalar_select 0, %s6, %s4
  %8 = sst [smem:[#allocation2]] %s2
  $region1: #{tpu_custom_call.1} parent=0
    #allocation3 [shape = 'u8[1024]{0}', space=vmem, size = 0x400, scoped, tag = 'output window, operand 0, single buffered']
    #allocation4 [shape = 's32[1]{0}', space=sflag, size = 0x4, scoped, tag = 'scoped memory for tpu_custom_call.1']
    %9 = vsyncpa [#allocation4], 0
    // Predicated region
    $region2: #{tpu_custom_call.1} parent=1 // pred_check
      _
    $region3: #{tpu_custom_call.1} parent=1 // pred_check_branch
      %11 = sbr.rel (0) target = $region5
    $region4: #{tpu_custom_call.1} parent=1 // pred_region
      _
    $region5: #{tpu_custom_call.1} parent=1 // pred_fallthru
      _
    // Predicated region
    $region6: #{tpu_custom_call.1} parent=1 // pred_check
      _
    $region7: #{tpu_custom_call.1} parent=1 // pred_check_branch
      %13 = sbr.rel (0) target = $region9
    $region8: #{tpu_custom_call.1} parent=1 // pred_region
      _
    $region9: #{tpu_custom_call.1} parent=1 // pred_fallthru
      _
    // Predicated region
    $region10: #{tpu_custom_call.1} parent=1 // pred_check
      _
    $region11: #{tpu_custom_call.1} parent=1 // pred_check_branch
      %15 = sbr.rel (0) target = $region13
    $region12: #{tpu_custom_call.1} parent=1 // pred_region
      _
    $region13: #{tpu_custom_call.1} parent=1 // pred_fallthru
      _
    %v16 = vld [vmem:[%s0] sm:$0x3]
    %v17 = vld [vmem:[%s1] sm:$0x1]
    %v19 = vlaneseq
    %v20 = vshrl.u32 %v19, 7
    %v21 = vsub.s32 0, %v20
    %v22 = vrot.slane %v17, %v21
    %v24 = vmul.f32 %v16, %v22
    %s25 = sld [smem:[#allocation2]]
    %vm26 = vcmask 254976
    %v27 = vsel %vm26, %v24, 0.0
    %28 = vadd.xlane.f32.xlu0 %v27
    %v29 = vpop.xlane.xlu0 %28
    %31 = vrot.lane.b32.xlu0 %v24, 96
    %v32 = vpop.permute.xlu0 %31
    %v34 = vsel %vm26, %v32, 0.0
    %35 = vadd.xlane.f32.xlu0 %v34
    %v36 = vpop.xlane.xlu0 %35
    %37 = vrot.lane.b32.xlu0 %v24, 64
    %v38 = vpop.permute.xlu0 %37
    %v40 = vsel %vm26, %v38, 0.0
    %41 = vadd.xlane.f32.xlu0 %v40
    %v42 = vpop.xlane.xlu0 %41
    %43 = vrot.lane.b32.xlu0 %v24, 32
    %v44 = vpop.permute.xlu0 %43
    %v46 = vsel %vm26, %v44, 0.0
    %47 = vadd.xlane.f32.xlu0 %v46
    %v48 = vpop.xlane.xlu0 %47
    %vm49 = vcmask 7168
    %v50 = vsel %vm49, %v29, %v36
    %vm51 = vcmask 15360
    %v52 = vsel %vm51, %v50, %v42
    %vm53 = vcmask 23552
    %v54 = vsel %vm53, %v52, %v48
    %v55 = vstv %s25
    %v56 = vadd.f32 %v54, %v55
    %v57 = vxor.u32 %v56, 2147483648
    %v58 = vmul.f32 %v57, 1.442695
    %v59 = vpow.pop %v58
    %v60 = vadd.f32 %v59, 1.0
    %v61 = vrcp.pop %v60
    %v62 = vmul.f32 1.0, %v61
    %vm63 = vcmask 25600
    %64 = vst.msk [vmem:[#allocation3] sm:$0x3] %vm63, %v62
    // Predicated region
    $region14: #{tpu_custom_call.1} parent=1 // pred_check
      _
    $region15: #{tpu_custom_call.1} parent=1 // pred_check_branch
      %66 = sbr.rel (0) target = $region17
    $region16: #{tpu_custom_call.1} parent=1 // pred_region
      %s68 = ssub.s32 32, 32
      %69 = vsyncadd [#allocation4], %s68
      %s71 = sshll.u32 [#allocation3], 4
      %s72 = int_to_ptr.vmem [resolvable:$true] %s71
      %74 = dma.vmem_to_hbm [thread:$0]  %s72, 32, %s3, [#allocation4]
    $region17: #{tpu_custom_call.1} parent=1 // pred_fallthru
      _
    // Predicated region
    $region18: #{tpu_custom_call.1} parent=1 // pred_check
      _
    $region19: #{tpu_custom_call.1} parent=1 // pred_check_branch
      %76 = sbr.rel (0) target = $region21
    $region20: #{tpu_custom_call.1} parent=1 // pred_region
      %77 = dma.done [#allocation4], 32
    $region21: #{tpu_custom_call.1} parent=1 // pred_fallthru
      _
    %78 = vsyncpa [#allocation4], 1

</llo_original>
